<compile_context>
chip_gen: v7x
topology: tpu7x:2x2x1
jax: 0.10.0
libtpu: 0.0.40
codegen_flags: <defaults>
</compile_context>

<pallas_src>
import jax
import jax.numpy as jnp
from jax.experimental import pallas as pl
from jax.experimental.pallas import tpu as pltpu

IN_DIM, H1, H2, H3, OUT_DIM = 91, 75, 100, 50, 1
PAD = 128  # lane-aligned width used for all hidden activations / weights
DIMS = [(IN_DIM, H1), (H1, H2), (H2, H3), (H3, OUT_DIM)]


def mlp_kernel(x_ref, w1_ref, b1_ref, w2_ref, w3_ref, w4t_ref, o_ref):
    # Layer 1: Linear(91->75) + ReLU.  bf16 operands, f32 accumulate; K=91 handled by MXU
    # padding.  b1 carries the real bias in cols 0..74 and a 1.0 "ones seed" in col 75.
    x = x_ref[...].astype(jnp.bfloat16)                                   # (TB, 91)
    h = jnp.dot(x, w1_ref[...], preferred_element_type=jnp.float32)      # (TB, 128)
    h = jnp.maximum(h + b1_ref[...], 0.0).astype(jnp.bfloat16)           # ones col @75

    # Layer 2: Linear(75->100) + ReLU.  Bias folded into row 75 of w2 (rides the ones
    # column through the MXU's f32 accumulation); col 100 regenerates the ones column.
    h = jnp.dot(h, w2_ref[...], preferred_element_type=jnp.float32)
    h = jnp.maximum(h, 0.0).astype(jnp.bfloat16)                          # ones col @100

    # Layer 3: Linear(100->50) + ReLU.  Bias folded into row 100; ones column -> col 50.
    h = jnp.dot(h, w3_ref[...], preferred_element_type=jnp.float32)
    h = jnp.maximum(h, 0.0).astype(jnp.bfloat16)                          # ones col @50

    # Layer 4: Linear(50->1), computed transposed for a lane-dense output.
    # w4t row 0 holds w4 (cols 0..49) and b4 (col 50); rows 1..7 are zero padding.
    out = jax.lax.dot_general(
        w4t_ref[...], h,
        dimension_numbers=(((1,), (1,)), ((), ())),
        preferred_element_type=jnp.float32)                               # (8, TB)
    o_ref[...] = out.astype(o_ref.dtype)


def pack_params(params):
    """Fold biases into lane-padded bf16 weights (see module docstring for layout)."""
    (w1, b1), (w2, b2), (w3, b3), (w4, b4) = [
        (w.astype(jnp.float32), jnp.reshape(b, (-1,)).astype(jnp.float32))
        for w, b in params
    ]
    f32 = jnp.float32
    w1p = jnp.zeros((IN_DIM, PAD), f32).at[:, :H1].set(w1)
    b1p = (jnp.zeros((1, PAD), f32)
           .at[0, :H1].set(b1)
           .at[0, H1].set(1.0))                       # ones seed -> ReLU(1)=1
    w2p = (jnp.zeros((PAD, PAD), f32)
           .at[:H1, :H2].set(w2)
           .at[H1, :H2].set(b2)                       # bias rides the ones column
           .at[H1, H2].set(1.0))                      # regenerate ones column
    w3p = (jnp.zeros((PAD, PAD), f32)
           .at[:H2, :H3].set(w3)
           .at[H2, :H3].set(b3)
           .at[H2, H3].set(1.0))
    w4t = (jnp.zeros((8, PAD), f32)                   # 8 rows so the M-dim is tile-friendly
           .at[0, :H3].set(w4.reshape(-1))
           .at[0, H3].set(b4[0]))
    return [w1p.astype(jnp.bfloat16), b1p,
            w2p.astype(jnp.bfloat16), w3p.astype(jnp.bfloat16),
            w4t.astype(jnp.bfloat16)]


def mlp_forward(x, packed, tile_b=4096):
    """x: (B, 91) float32; packed: output of pack_params(). Returns (B, 1) float32."""
    B, F = x.shape
    assert F == IN_DIM, F

    tile_b = max(8, (tile_b // 8) * 8)          # sublane-multiple tile
    tile_b = min(tile_b, 8 * pl.cdiv(B, 8))     # don't exceed (rounded) batch
    grid_b = pl.cdiv(B, tile_b)
    b_pad = grid_b * tile_b
    x = x.astype(jnp.float32)
    if b_pad != B:                              # only pad rows when the tile doesn't divide B
        x = jnp.pad(x, ((0, b_pad - B), (0, 0)))

    def const_spec(a):
        # Constant index_map -> loaded once, kept VMEM-resident across the batch grid.
        return pl.BlockSpec(a.shape, lambda i, _nd=a.ndim: (0,) * _nd)

    out = pl.pallas_call(
        mlp_kernel,
        out_shape=jax.ShapeDtypeStruct((grid_b, 8, tile_b), jnp.float32),
        grid=(grid_b,),
        in_specs=[pl.BlockSpec((tile_b, IN_DIM), lambda i: (i, 0))]
                 + [const_spec(p) for p in packed],
        out_specs=pl.BlockSpec((None, 8, tile_b), lambda i: (i, 0, 0)),
        compiler_params=pltpu.CompilerParams(
            dimension_semantics=("parallel",),
            vmem_limit_bytes=32 * 1024 * 1024),
    )(x, *packed)

    # Row 0 of each (8, tile_b) tile holds the real outputs (lane-dense in the kernel);
    # reassembling to (B, 1) touches only B*4 bytes.
    return out[:, 0, :].reshape(b_pad, 1)[:B]


def init_params(key):
    """Deterministic init mimicking nn.Linear: w (in, out), b (out,)."""
    params = []
    for fan_in, fan_out in DIMS:
        key, kw, kb = jax.random.split(key, 3)
        bound = 1.0 / (fan_in ** 0.5)
        w = jax.random.uniform(kw, (fan_in, fan_out), jnp.float32, -bound, bound)
        b = jax.random.uniform(kb, (fan_out,), jnp.float32, -bound, bound)
        params.append((w, b))
    return params


def mlp_reference(x, params):
    """Pure-JAX reference mirroring the kernel's numerics (bf16 operands, f32 accumulate,
    bf16-rounded biases for the folded layers 2-4, f32 bias for layer 1)."""
    bf = lambda a: a.astype(jnp.bfloat16).astype(jnp.float32)
    hp = jax.lax.Precision.HIGHEST
    (w1, b1), (w2, b2), (w3, b3), (w4, b4) = params
    h = jnp.maximum(jnp.dot(bf(x), bf(w1), precision=hp) + b1.reshape(1, -1), 0.0)
    h = jnp.maximum(jnp.dot(bf(h), bf(w2), precision=hp) + bf(b2).reshape(1, -1), 0.0)
    h = jnp.maximum(jnp.dot(bf(h), bf(w3), precision=hp) + bf(b3).reshape(1, -1), 0.0)
    return jnp.dot(bf(h), bf(w4), precision=hp) + bf(b4).reshape(1, -1)


if __name__ == "__main__":
    key = jax.random.PRNGKey(0)
    kx, kx2, kp = jax.random.split(key, 3)

    params = init_params(kp)
    packed = pack_params(params)

    # Single-tile sanity check (tile clamps to the 8-row batch).
    batch = 8
    x = jax.random.normal(kx, (batch, IN_DIM), dtype=jnp.float32)
    out = jax.block_until_ready(mlp_forward(x, packed))
    ref = mlp_reference(x, params)
    assert out.shape == (batch, 1), out.shape
    err = float(jnp.max(jnp.abs(out - ref)))
    assert err < 5e-3, f"max abs diff {err}"

    # Multi-tile path: exercises the batch grid, resident weights, row padding,
    # bias folding, and the lane-dense output reassembly.
    batch2 = 300
    x2 = jax.random.normal(kx2, (batch2, IN_DIM), dtype=jnp.float32)
    out2 = jax.block_until_ready(mlp_forward(x2, packed, tile_b=128))
    ref2 = mlp_reference(x2, params)
    assert out2.shape == (batch2, 1), out2.shape
    err2 = float(jnp.max(jnp.abs(out2 - ref2)))
    assert err2 < 5e-3, f"max abs diff {err2}"

    print("KERNEL_OK")
</pallas_src>

<mosaic_0001>
module attributes {stable_mosaic.version = 11 : i64} {
  func.func @mlp_kernel(%arg0: i32, %arg1: memref<8x91xf32, #tpu.memory_space<vmem>>, %arg2: memref<91x128xbf16, #tpu.memory_space<vmem>>, %arg3: memref<1x128xf32, #tpu.memory_space<vmem>>, %arg4: memref<128x128xbf16, #tpu.memory_space<vmem>>, %arg5: memref<128x128xbf16, #tpu.memory_space<vmem>>, %arg6: memref<8x128xbf16, #tpu.memory_space<vmem>>, %arg7: memref<1x8x8xf32, #tpu.memory_space<vmem>>) attributes {dimension_semantics = [#tpu.dimension_semantics<parallel>], iteration_bounds = array<i64: 1>, scalar_prefetch = 0 : i64, scratch_operands = 0 : i64, tpu.core_type = #tpu.core_type<tc>, window_params = [{transform_indices = @transform_0, window_bounds = array<i64: 8, 91>}, {pipeline_mode = #tpu.pipeline_mode<synchronous>, transform_indices = @transform_1, window_bounds = array<i64: 91, 128>}, {pipeline_mode = #tpu.pipeline_mode<synchronous>, transform_indices = @transform_2, window_bounds = array<i64: 1, 128>}, {pipeline_mode = #tpu.pipeline_mode<synchronous>, transform_indices = @transform_3, window_bounds = array<i64: 128, 128>}, {pipeline_mode = #tpu.pipeline_mode<synchronous>, transform_indices = @transform_4, window_bounds = array<i64: 128, 128>}, {pipeline_mode = #tpu.pipeline_mode<synchronous>, transform_indices = @transform_5, window_bounds = array<i64: 8, 128>}, {transform_indices = @transform_6, window_bounds = array<i64: 1, 8, 8>}]} {
    %c0 = arith.constant 0 : index
    %c0_0 = arith.constant 0 : index
    %0 = vector.load %arg1[%c0, %c0_0] : memref<8x91xf32, #tpu.memory_space<vmem>>, vector<8x91xf32>
    %1 = arith.truncf %0 : vector<8x91xf32> to vector<8x91xbf16>
    %c0_1 = arith.constant 0 : index
    %c0_2 = arith.constant 0 : index
    %2 = vector.load %arg2[%c0_1, %c0_2] : memref<91x128xbf16, #tpu.memory_space<vmem>>, vector<91x128xbf16>
    %cst = arith.constant dense<0.000000e+00> : vector<8x128xf32>
    %3 = tpu.matmul %1, %2, %cst {dimension_numbers = #tpu.dot_dimension_numbers<[1], [0], [0], [1], [0, 0, 1, 1], [], []>} : vector<8x91xbf16>, vector<91x128xbf16>, vector<8x128xf32> -> vector<8x128xf32>
    %c0_3 = arith.constant 0 : index
    %c0_4 = arith.constant 0 : index
    %4 = vector.load %arg3[%c0_3, %c0_4] : memref<1x128xf32, #tpu.memory_space<vmem>>, vector<1x128xf32>
    %5 = vector.broadcast %4 : vector<1x128xf32> to vector<8x128xf32>
    %6 = arith.addf %3, %5 : vector<8x128xf32>
    %cst_5 = arith.constant 0.000000e+00 : f32
    %7 = vector.broadcast %cst_5 : f32 to vector<8x128xf32>
    %8 = arith.maximumf %6, %7 : vector<8x128xf32>
    %9 = arith.truncf %8 : vector<8x128xf32> to vector<8x128xbf16>
    %c0_6 = arith.constant 0 : index
    %c0_7 = arith.constant 0 : index
    %10 = vector.load %arg4[%c0_6, %c0_7] : memref<128x128xbf16, #tpu.memory_space<vmem>>, vector<128x128xbf16>
    %cst_8 = arith.constant dense<0.000000e+00> : vector<8x128xf32>
    %11 = tpu.matmul %9, %10, %cst_8 {dimension_numbers = #tpu.dot_dimension_numbers<[1], [0], [0], [1], [0, 0, 1, 1], [], []>} : vector<8x128xbf16>, vector<128x128xbf16>, vector<8x128xf32> -> vector<8x128xf32>
    %cst_9 = arith.constant 0.000000e+00 : f32
    %12 = vector.broadcast %cst_9 : f32 to vector<8x128xf32>
    %13 = arith.maximumf %11, %12 : vector<8x128xf32>
    %14 = arith.truncf %13 : vector<8x128xf32> to vector<8x128xbf16>
    %c0_10 = arith.constant 0 : index
    %c0_11 = arith.constant 0 : index
    %15 = vector.load %arg5[%c0_10, %c0_11] : memref<128x128xbf16, #tpu.memory_space<vmem>>, vector<128x128xbf16>
    %cst_12 = arith.constant dense<0.000000e+00> : vector<8x128xf32>
    %16 = tpu.matmul %14, %15, %cst_12 {dimension_numbers = #tpu.dot_dimension_numbers<[1], [0], [0], [1], [0, 0, 1, 1], [], []>} : vector<8x128xbf16>, vector<128x128xbf16>, vector<8x128xf32> -> vector<8x128xf32>
    %cst_13 = arith.constant 0.000000e+00 : f32
    %17 = vector.broadcast %cst_13 : f32 to vector<8x128xf32>
    %18 = arith.maximumf %16, %17 : vector<8x128xf32>
    %19 = arith.truncf %18 : vector<8x128xf32> to vector<8x128xbf16>
    %c0_14 = arith.constant 0 : index
    %c0_15 = arith.constant 0 : index
    %20 = vector.load %arg6[%c0_14, %c0_15] : memref<8x128xbf16, #tpu.memory_space<vmem>>, vector<8x128xbf16>
    %cst_16 = arith.constant dense<0.000000e+00> : vector<8x8xf32>
    %21 = tpu.matmul %20, %19, %cst_16 {dimension_numbers = #tpu.dot_dimension_numbers<[1], [1], [0], [0], [0, 0, 1, 0], [], []>} : vector<8x128xbf16>, vector<8x128xbf16>, vector<8x8xf32> -> vector<8x8xf32>
    %c0_17 = arith.constant 0 : index
    %c0_18 = arith.constant 0 : index
    %c0_19 = arith.constant 0 : index
    %22 = vector.load %arg7[%c0_17, %c0_18, %c0_19] : memref<1x8x8xf32, #tpu.memory_space<vmem>>, vector<1x8x8xf32>
    %23 = vector.shape_cast %22 : vector<1x8x8xf32> to vector<8x8xf32>
    %24 = vector.shape_cast %21 : vector<8x8xf32> to vector<1x8x8xf32>
    tpu.vector_store %arg7[%c0_17, %c0_18, %c0_19], %24 {strides = array<i32>} : memref<1x8x8xf32, #tpu.memory_space<vmem>>, vector<1x8x8xf32>,
    return
  }
  func.func @transform_0(%arg0: i32) -> (i32, i32) {
    %c0_i32 = arith.constant 0 : i32
    %c0_i32_0 = arith.constant 0 : i32
    return %arg0, %c0_i32 : i32, i32
  }
  func.func @transform_1(%arg0: i32) -> (i32, i32) {
    %c0_i32 = arith.constant 0 : i32
    %c0_i32_0 = arith.constant 0 : i32
    %c0_i32_1 = arith.constant 0 : i32
    return %c0_i32, %c0_i32_0 : i32, i32
  }
  func.func @transform_2(%arg0: i32) -> (i32, i32) {
    %c0_i32 = arith.constant 0 : i32
    %c0_i32_0 = arith.constant 0 : i32
    %c0_i32_1 = arith.constant 0 : i32
    return %c0_i32, %c0_i32_0 : i32, i32
  }
  func.func @transform_3(%arg0: i32) -> (i32, i32) {
    %c0_i32 = arith.constant 0 : i32
    %c0_i32_0 = arith.constant 0 : i32
    %c0_i32_1 = arith.constant 0 : i32
    return %c0_i32, %c0_i32_0 : i32, i32
  }
  func.func @transform_4(%arg0: i32) -> (i32, i32) {
    %c0_i32 = arith.constant 0 : i32
    %c0_i32_0 = arith.constant 0 : i32
    %c0_i32_1 = arith.constant 0 : i32
    return %c0_i32, %c0_i32_0 : i32, i32
  }
  func.func @transform_5(%arg0: i32) -> (i32, i32) {
    %c0_i32 = arith.constant 0 : i32
    %c0_i32_0 = arith.constant 0 : i32
    %c0_i32_1 = arith.constant 0 : i32
    return %c0_i32, %c0_i32_0 : i32, i32
  }
  func.func @transform_6(%arg0: i32) -> (i32, i32, i32) {
    %c0_i32 = arith.constant 0 : i32
    %c0_i32_0 = arith.constant 0 : i32
    %c0_i32_1 = arith.constant 0 : i32
    return %arg0, %c0_i32, %c0_i32_0 : i32, i32, i32
  }
}

</mosaic_0001>

<llo_original>
// kernel: tpu_custom_call.1
$region0: #{tpu_custom_call.1}
  #allocation0 [shape = 'u32[]', space=smem, size = 0x4, offset = 0x4, fixed_abs, tag = 'smem constant byte address 0x4 - core index']
  #allocation1 [shape = 'u32[144,128]{1,0:T(1,128)}', space=vmem, size = 0x12000, scoped, tag = 'internal scratch']
  %s0 = inlined_call_operand.hbm [shape: f32[8,91], index: 0, kind: input, shape index: {}]
  %s1 = inlined_call_operand.hbm [shape: bf16[91,128], index: 1, kind: input, shape index: {}]
  %s2 = inlined_call_operand.vmem [shape: f32[1,128], index: 2, kind: input, shape index: {}]
  %s3 = inlined_call_operand.hbm [shape: bf16[128,128], index: 3, kind: input, shape index: {}]
  %s4 = inlined_call_operand.hbm [shape: bf16[128,128], index: 4, kind: input, shape index: {}]
  %s5 = inlined_call_operand.vmem [shape: bf16[8,128], index: 5, kind: input, shape index: {}]
  %s6 = inlined_call_operand.hbm [shape: f32[1,8,8], index: 6, kind: output, shape index: {}]
  %s7 = sld [smem:[#allocation0]]
  $region50: #{tpu_custom_call.1} parent=0
    _
  %s9 = ssub.s32 1, %s7
  %s10 = scalar_select 0, %s9, %s7
  $region1: #{tpu_custom_call.1} parent=0
    #allocation2 [shape = 'u8[4096]{0}', space=vmem, size = 0x1000, scoped, tag = 'input window, operand 0, single buffered']
    #allocation3 [shape = 's32[1]{0}', space=sflag, size = 0x4, scoped, tag = 'scoped memory for tpu_custom_call.1']
    #allocation4 [shape = 's32[1]{0}', space=sflag, size = 0x4, scoped, tag = 'scoped memory for tpu_custom_call.1']
    #allocation5 [shape = 'u8[24576]{0}', space=vmem, size = 0x6000, scoped, tag = 'input window, operand 1, single buffered']
    #allocation6 [shape = 's32[1]{0}', space=sflag, size = 0x4, scoped, tag = 'scoped memory for tpu_custom_call.1']
    #allocation7 [shape = 'u8[32768]{0}', space=vmem, size = 0x8000, scoped, tag = 'input window, operand 3, single buffered']
    #allocation8 [shape = 'u8[32768]{0}', space=vmem, size = 0x8000, scoped, tag = 'input window, operand 4, single buffered']
    #allocation9 [shape = 's32[1]{0}', space=sflag, size = 0x4, scoped, tag = 'scoped memory for tpu_custom_call.1']
    #allocation10 [shape = 'u8[4096]{0}', space=vmem, size = 0x1000, scoped, tag = 'output window, operand 0, single buffered']
    %11 = vsyncpa [#allocation3], 0
    %12 = vsyncpa [#allocation6], 0
    %13 = vsyncpa [#allocation9], 0
    %14 = vsyncpa [#allocation4], 0
    // Predicated region
    $region2: #{tpu_custom_call.1} parent=1 // pred_check
      _
    $region3: #{tpu_custom_call.1} parent=1 // pred_check_branch
      %16 = sbr.rel (0) target = $region5
    $region4: #{tpu_custom_call.1} parent=1 // pred_region
      %s18 = ssub.s32 128, 128
      %19 = vsyncadd [#allocation3], %s18
      %s21 = sshll.u32 [#allocation2], 4
      %s22 = int_to_ptr.vmem [resolvable:$true] %s21
      %24 = dma.hbm_to_vmem [thread:$0]  %s0, 128, %s22, [#allocation3]
    $region5: #{tpu_custom_call.1} parent=1 // pred_fallthru
      _
    // Predicated region
    $region6: #{tpu_custom_call.1} parent=1 // pred_check
      _
    $region7: #{tpu_custom_call.1} parent=1 // pred_check_branch
      %26 = sbr.rel (0) target = $region9
    $region8: #{tpu_custom_call.1} parent=1 // pred_region
      %s28 = ssub.s32 768, 768
      %29 = vsyncadd [#allocation6], %s28
      %s30 = sshll.u32 [#allocation5], 4
      %s31 = int_to_ptr.vmem [resolvable:$true] %s30
      %36 = dma.hbm_to_vmem [thread:$0]  %s1, 768, %s31, [#allocation6], 64, 64, 4
    $region9: #{tpu_custom_call.1} parent=1 // pred_fallthru
      _
    // Predicated region
    $region10: #{tpu_custom_call.1} parent=1 // pred_check
      _
    $region11: #{tpu_custom_call.1} parent=1 // pred_check_branch
      %38 = sbr.rel (0) target = $region13
    $region12: #{tpu_custom_call.1} parent=1 // pred_region
      _
    $region13: #{tpu_custom_call.1} parent=1 // pred_fallthru
      _
    // Predicated region
    $region14: #{tpu_custom_call.1} parent=1 // pred_check
      _
    $region15: #{tpu_custom_call.1} parent=1 // pred_check_branch
      %40 = sbr.rel (0) target = $region17
    $region16: #{tpu_custom_call.1} parent=1 // pred_region
      %s42 = ssub.s32 1024, 1024
      %43 = vsyncadd [#allocation6], %s42
      %s44 = sshll.u32 [#allocation7], 4
      %s45 = int_to_ptr.vmem [resolvable:$true] %s44
      %50 = dma.hbm_to_vmem [thread:$0]  %s3, 1024, %s45, [#allocation6], 64, 64, 4
    $region17: #{tpu_custom_call.1} parent=1 // pred_fallthru
      _
    // Predicated region
    $region18: #{tpu_custom_call.1} parent=1 // pred_check
      _
    $region19: #{tpu_custom_call.1} parent=1 // pred_check_branch
      %52 = sbr.rel (0) target = $region21
    $region20: #{tpu_custom_call.1} parent=1 // pred_region
      %s54 = ssub.s32 1024, 1024
      %55 = vsyncadd [#allocation9], %s54
      %s56 = sshll.u32 [#allocation8], 4
      %s57 = int_to_ptr.vmem [resolvable:$true] %s56
      %62 = dma.hbm_to_vmem [thread:$0]  %s4, 1024, %s57, [#allocation9], 64, 64, 4
    $region21: #{tpu_custom_call.1} parent=1 // pred_fallthru
      _
    // Predicated region
    $region22: #{tpu_custom_call.1} parent=1 // pred_check
      _
    $region23: #{tpu_custom_call.1} parent=1 // pred_check_branch
      %64 = sbr.rel (0) target = $region25
    $region24: #{tpu_custom_call.1} parent=1 // pred_region
      _
    $region25: #{tpu_custom_call.1} parent=1 // pred_fallthru
      _
    // Predicated region
    $region26: #{tpu_custom_call.1} parent=1 // pred_check
      _
    $region27: #{tpu_custom_call.1} parent=1 // pred_check_branch
      %66 = sbr.rel (0) target = $region29
    $region28: #{tpu_custom_call.1} parent=1 // pred_region
      %67 = dma.done [#allocation3], 128
    $region29: #{tpu_custom_call.1} parent=1 // pred_fallthru
      _
    // Predicated region
    $region30: #{tpu_custom_call.1} parent=1 // pred_check
      _
    $region31: #{tpu_custom_call.1} parent=1 // pred_check_branch
      %69 = sbr.rel (0) target = $region33
    $region32: #{tpu_custom_call.1} parent=1 // pred_region
      %70 = dma.done [#allocation6], 768
    $region33: #{tpu_custom_call.1} parent=1 // pred_fallthru
      _
    // Predicated region
    $region34: #{tpu_custom_call.1} parent=1 // pred_check
      _
    $region35: #{tpu_custom_call.1} parent=1 // pred_check_branch
      %72 = sbr.rel (0) target = $region37
    $region36: #{tpu_custom_call.1} parent=1 // pred_region
      %73 = dma.done [#allocation6], 1024
    $region37: #{tpu_custom_call.1} parent=1 // pred_fallthru
      _
    // Predicated region
    $region38: #{tpu_custom_call.1} parent=1 // pred_check
      _
    $region39: #{tpu_custom_call.1} parent=1 // pred_check_branch
      %75 = sbr.rel (0) target = $region41
    $region40: #{tpu_custom_call.1} parent=1 // pred_region
      %76 = dma.done [#allocation9], 1024
    $region41: #{tpu_custom_call.1} parent=1 // pred_fallthru
      _
    %v78 = vld [vmem:[#allocation2] sm:$0xff]
    %v79 = vpack.c.bf16 %v78, %v78
    %v80 = vld [vmem:[#allocation5] sm:$0xf]
    %v81 = vld [vmem:[#allocation5 + $0x4] sm:$0xf]
    %v82 = vld [vmem:[#allocation5 + $0x8] sm:$0xf]
    %v83 = vld [vmem:[#allocation5 + $0xc] sm:$0xf]
    %v84 = vld [vmem:[#allocation5 + $0x10] sm:$0xf]
    %v85 = vld [vmem:[#allocation5 + $0x14] sm:$0xf]
    %v86 = vld [vmem:[#allocation5 + $0x18] sm:$0xf]
    %v87 = vld [vmem:[#allocation5 + $0x1c] sm:$0xf]
    %v88 = vld [vmem:[#allocation5 + $0x20] sm:$0xf]
    %v89 = vld [vmem:[#allocation5 + $0x24] sm:$0xf]
    %v90 = vld [vmem:[#allocation5 + $0x28] sm:$0xf]
    %v91 = vld [vmem:[#allocation5 + $0x2c] sm:$0x3]
    %v92 = vld [vmem:[%s2] sm:$0x1]
    %v94 = vlaneseq
    %v95 = vshrl.u32 %v94, 7
    %v96 = vsub.s32 0, %v95
    %v97 = vrot.slane %v92, %v96
    %v111 = vunpack.c.l.b16 %v80
    %v112 = vunpack.c.l.b16 %v81
    %v113 = vunpack.c.l.b16 %v82
    %v114 = vunpack.c.l.b16 %v83
    %v115 = vunpack.c.l.b16 %v84
    %v116 = vunpack.c.l.b16 %v85
    %v117 = vunpack.c.l.b16 %v86
    %v118 = vunpack.c.l.b16 %v87
    %v119 = vunpack.c.l.b16 %v88
    %v120 = vunpack.c.l.b16 %v89
    %v121 = vunpack.c.l.b16 %v90
    %v122 = vunpack.c.l.b16 %v91
    %v123 = vpack.c.b16 %v112, %v111
    %v124 = vpack.c.b16 %v114, %v113
    %v125 = vpack.c.b16 %v116, %v115
    %v126 = vpack.c.b16 %v118, %v117
    %v127 = vpack.c.b16 %v120, %v119
    %v128 = vpack.c.b16 %v122, %v121
    %vm134 = vcmask 744448
    %v136 = vsel %vm134, %v79, 0
    %vm138 = vcmask 1044480
    %vm139 = vcmask 1045504
    %v140 = vsel %vm138, 4294967295, 65535
    %v141 = vsel %vm139, %v140, 0
    %v143 = vand.u32 %v128, %v141
    %145 = vmatprep.subr.bf16.mxu0 0
    %146 = vmatpush1.bf16.msra.mxu0 %v123
    %147 = vmatprep.subr.bf16.mxu0 0
    %148 = vmatpush1.bf16.msra.mxu0 %v124
    %149 = vmatprep.subr.bf16.mxu0 0
    %150 = vmatpush1.bf16.msra.mxu0 %v125
    %151 = vmatprep.subr.bf16.mxu0 0
    %152 = vmatpush1.bf16.msra.mxu0 %v126
    %153 = vmatprep.subr.bf16.mxu0 0
    %154 = vmatpush1.bf16.msra.mxu0 %v127
    %155 = vmatprep.subr.bf16.mxu0 0
    %156 = vmatpush1.bf16.msra.mxu0 %v143
    %157 = vmatprep.subr.bf16.mxu0 0
    %158 = vmatpush1.bf16.msra.mxu0 0
    %159 = vmatprep.subr.bf16.mxu0 0
    %160 = vmatpush1.bf16.msra.mxu0 0
    %161 = vmatprep.subr.bf16.mxu0 0
    %162 = vmatpush1.bf16.msra.mxu0 0
    %163 = vmatprep.subr.bf16.mxu0 0
    %164 = vmatpush1.bf16.msra.mxu0 0
    %165 = vmatprep.subr.bf16.mxu0 0
    %166 = vmatpush1.bf16.msra.mxu0 0
    %167 = vmatprep.subr.bf16.mxu0 0
    %168 = vmatpush1.bf16.msra.mxu0 0
    %169 = vmatprep.subr.bf16.mxu0 0
    %170 = vmatpush1.bf16.msra.mxu0 0
    %171 = vmatprep.subr.bf16.mxu0 0
    %172 = vmatpush1.bf16.msra.mxu0 0
    %173 = vmatprep.subr.bf16.mxu0 0
    %174 = vmatpush1.bf16.msra.mxu0 0
    %175 = vmatprep.subr.bf16.mxu0 0
    %176 = vmatpush1.bf16.msra.mxu0 0
    %177 = vmatprep.mubr.bf16.mxu0 0
    %178 = vmatmul.mubr.bf16.gmra.mrb[0].mxu0 %v136
    %v179 = vpop.f32.mrb[0].mxu0
    %v180 = vadd.f32 %v97, %v179
    %v181 = vpop.f32.mrb[0].mxu0
    %v182 = vpop.f32.mrb[0].mxu0
    %v183 = vpop.f32.mrb[0].mxu0
    %184 = vdwg.mxu0
    %v185 = vmax.f32 %v180, 0.0
    %v186 = vpack.c.bf16 %v185, %v185
    %v187 = vld [vmem:[#allocation7] sm:$0xf]
    %v188 = vld [vmem:[#allocation7 + $0x4] sm:$0xf]
    %v189 = vld [vmem:[#allocation7 + $0x8] sm:$0xf]
    %v190 = vld [vmem:[#allocation7 + $0xc] sm:$0xf]
    %v191 = vld [vmem:[#allocation7 + $0x10] sm:$0xf]
    %v192 = vld [vmem:[#allocation7 + $0x14] sm:$0xf]
    %v193 = vld [vmem:[#allocation7 + $0x18] sm:$0xf]
    %v194 = vld [vmem:[#allocation7 + $0x1c] sm:$0xf]
    %v195 = vld [vmem:[#allocation7 + $0x20] sm:$0xf]
    %v196 = vld [vmem:[#allocation7 + $0x24] sm:$0xf]
    %v197 = vld [vmem:[#allocation7 + $0x28] sm:$0xf]
    %v198 = vld [vmem:[#allocation7 + $0x2c] sm:$0xf]
    %v199 = vld [vmem:[#allocation7 + $0x30] sm:$0xf]
    %v200 = vld [vmem:[#allocation7 + $0x34] sm:$0xf]
    %v201 = vld [vmem:[#allocation7 + $0x38] sm:$0xf]
    %v202 = vld [vmem:[#allocation7 + $0x3c] sm:$0xf]
    %v219 = vunpack.c.l.b16 %v187
    %v220 = vunpack.c.l.b16 %v188
    %v221 = vunpack.c.l.b16 %v189
    %v222 = vunpack.c.l.b16 %v190
    %v223 = vunpack.c.l.b16 %v191
    %v224 = vunpack.c.l.b16 %v192
    %v225 = vunpack.c.l.b16 %v193
    %v226 = vunpack.c.l.b16 %v194
    %v227 = vunpack.c.l.b16 %v195
    %v228 = vunpack.c.l.b16 %v196
    %v229 = vunpack.c.l.b16 %v197
    %v230 = vunpack.c.l.b16 %v198
    %v231 = vunpack.c.l.b16 %v199
    %v232 = vunpack.c.l.b16 %v200
    %v233 = vunpack.c.l.b16 %v201
    %v234 = vunpack.c.l.b16 %v202
    %v235 = vpack.c.b16 %v220, %v219
    %v236 = vpack.c.b16 %v222, %v221
    %v237 = vpack.c.b16 %v224, %v223
    %v238 = vpack.c.b16 %v226, %v225
    %v239 = vpack.c.b16 %v228, %v227
    %v240 = vpack.c.b16 %v230, %v229
    %v241 = vpack.c.b16 %v232, %v231
    %v242 = vpack.c.b16 %v234, %v233
    %251 = vmatprep.subr.bf16.mxu0 0
    %252 = vmatpush1.bf16.msra.mxu0 %v235
    %253 = vmatprep.subr.bf16.mxu0 0
    %254 = vmatpush1.bf16.msra.mxu0 %v236
    %255 = vmatprep.subr.bf16.mxu0 0
    %256 = vmatpush1.bf16.msra.mxu0 %v237
    %257 = vmatprep.subr.bf16.mxu0 0
    %258 = vmatpush1.bf16.msra.mxu0 %v238
    %259 = vmatprep.subr.bf16.mxu0 0
    %260 = vmatpush1.bf16.msra.mxu0 %v239
    %261 = vmatprep.subr.bf16.mxu0 0
    %262 = vmatpush1.bf16.msra.mxu0 %v240
    %263 = vmatprep.subr.bf16.mxu0 0
    %264 = vmatpush1.bf16.msra.mxu0 %v241
    %265 = vmatprep.subr.bf16.mxu0 0
    %266 = vmatpush1.bf16.msra.mxu0 %v242
    %267 = vmatprep.subr.bf16.mxu0 0
    %268 = vmatpush1.bf16.msra.mxu0 0
    %269 = vmatprep.subr.bf16.mxu0 0
    %270 = vmatpush1.bf16.msra.mxu0 0
    %271 = vmatprep.subr.bf16.mxu0 0
    %272 = vmatpush1.bf16.msra.mxu0 0
    %273 = vmatprep.subr.bf16.mxu0 0
    %274 = vmatpush1.bf16.msra.mxu0 0
    %275 = vmatprep.subr.bf16.mxu0 0
    %276 = vmatpush1.bf16.msra.mxu0 0
    %277 = vmatprep.subr.bf16.mxu0 0
    %278 = vmatpush1.bf16.msra.mxu0 0
    %279 = vmatprep.subr.bf16.mxu0 0
    %280 = vmatpush1.bf16.msra.mxu0 0
    %281 = vmatprep.subr.bf16.mxu0 0
    %282 = vmatpush1.bf16.msra.mxu0 0
    %283 = vmatprep.mubr.bf16.mxu0 0
    %284 = vmatmul.mubr.bf16.gmra.mrb[0].mxu0 %v186
    %v285 = vpop.f32.mrb[0].mxu0
    %v286 = vadd.f32 0.0, %v285
    %v287 = vpop.f32.mrb[0].mxu0
    %v288 = vpop.f32.mrb[0].mxu0
    %v289 = vpop.f32.mrb[0].mxu0
    %290 = vdwg.mxu0
    %v291 = vmax.f32 %v286, 0.0
    %v292 = vpack.c.bf16 %v291, %v291
    %v293 = vld [vmem:[#allocation8] sm:$0xf]
    %v294 = vld [vmem:[#allocation8 + $0x4] sm:$0xf]
    %v295 = vld [vmem:[#allocation8 + $0x8] sm:$0xf]
    %v296 = vld [vmem:[#allocation8 + $0xc] sm:$0xf]
    %v297 = vld [vmem:[#allocation8 + $0x10] sm:$0xf]
    %v298 = vld [vmem:[#allocation8 + $0x14] sm:$0xf]
    %v299 = vld [vmem:[#allocation8 + $0x18] sm:$0xf]
    %v300 = vld [vmem:[#allocation8 + $0x1c] sm:$0xf]
    %v301 = vld [vmem:[#allocation8 + $0x20] sm:$0xf]
    %v302 = vld [vmem:[#allocation8 + $0x24] sm:$0xf]
    %v303 = vld [vmem:[#allocation8 + $0x28] sm:$0xf]
    %v304 = vld [vmem:[#allocation8 + $0x2c] sm:$0xf]
    %v305 = vld [vmem:[#allocation8 + $0x30] sm:$0xf]
    %v306 = vld [vmem:[#allocation8 + $0x34] sm:$0xf]
    %v307 = vld [vmem:[#allocation8 + $0x38] sm:$0xf]
    %v308 = vld [vmem:[#allocation8 + $0x3c] sm:$0xf]
    %v325 = vunpack.c.l.b16 %v293
    %v326 = vunpack.c.l.b16 %v294
    %v327 = vunpack.c.l.b16 %v295
    %v328 = vunpack.c.l.b16 %v296
    %v329 = vunpack.c.l.b16 %v297
    %v330 = vunpack.c.l.b16 %v298
    %v331 = vunpack.c.l.b16 %v299
    %v332 = vunpack.c.l.b16 %v300
    %v333 = vunpack.c.l.b16 %v301
    %v334 = vunpack.c.l.b16 %v302
    %v335 = vunpack.c.l.b16 %v303
    %v336 = vunpack.c.l.b16 %v304
    %v337 = vunpack.c.l.b16 %v305
    %v338 = vunpack.c.l.b16 %v306
    %v339 = vunpack.c.l.b16 %v307
    %v340 = vunpack.c.l.b16 %v308
    %v341 = vpack.c.b16 %v326, %v325
    %v342 = vpack.c.b16 %v328, %v327
    %v343 = vpack.c.b16 %v330, %v329
    %v344 = vpack.c.b16 %v332, %v331
    %v345 = vpack.c.b16 %v334, %v333
    %v346 = vpack.c.b16 %v336, %v335
    %v347 = vpack.c.b16 %v338, %v337
    %v348 = vpack.c.b16 %v340, %v339
    %357 = vmatprep.subr.bf16.mxu0 0
    %358 = vmatpush1.bf16.msra.mxu0 %v341
    %359 = vmatprep.subr.bf16.mxu0 0
    %360 = vmatpush1.bf16.msra.mxu0 %v342
    %361 = vmatprep.subr.bf16.mxu0 0
    %362 = vmatpush1.bf16.msra.mxu0 %v343
    %363 = vmatprep.subr.bf16.mxu0 0
    %364 = vmatpush1.bf16.msra.mxu0 %v344
    %365 = vmatprep.subr.bf16.mxu0 0
    %366 = vmatpush1.bf16.msra.mxu0 %v345
    %367 = vmatprep.subr.bf16.mxu0 0
    %368 = vmatpush1.bf16.msra.mxu0 %v346
    %369 = vmatprep.subr.bf16.mxu0 0
    %370 = vmatpush1.bf16.msra.mxu0 %v347
    %371 = vmatprep.subr.bf16.mxu0 0
    %372 = vmatpush1.bf16.msra.mxu0 %v348
    %373 = vmatprep.subr.bf16.mxu0 0
    %374 = vmatpush1.bf16.msra.mxu0 0
    %375 = vmatprep.subr.bf16.mxu0 0
    %376 = vmatpush1.bf16.msra.mxu0 0
    %377 = vmatprep.subr.bf16.mxu0 0
    %378 = vmatpush1.bf16.msra.mxu0 0
    %379 = vmatprep.subr.bf16.mxu0 0
    %380 = vmatpush1.bf16.msra.mxu0 0
    %381 = vmatprep.subr.bf16.mxu0 0
    %382 = vmatpush1.bf16.msra.mxu0 0
    %383 = vmatprep.subr.bf16.mxu0 0
    %384 = vmatpush1.bf16.msra.mxu0 0
    %385 = vmatprep.subr.bf16.mxu0 0
    %386 = vmatpush1.bf16.msra.mxu0 0
    %387 = vmatprep.subr.bf16.mxu0 0
    %388 = vmatpush1.bf16.msra.mxu0 0
    %389 = vmatprep.mubr.bf16.mxu0 0
    %390 = vmatmul.mubr.bf16.gmra.mrb[0].mxu0 %v292
    %v391 = vpop.f32.mrb[0].mxu0
    %v392 = vadd.f32 0.0, %v391
    %v393 = vpop.f32.mrb[0].mxu0
    %v394 = vpop.f32.mrb[0].mxu0
    %v395 = vpop.f32.mrb[0].mxu0
    %396 = vdwg.mxu0
    %v397 = vmax.f32 %v392, 0.0
    %v398 = vpack.c.bf16 %v397, %v397
    %v399 = vld [vmem:[%s5] sm:$0xf]
    %400 = vmatprep.subr.bf16.mxu0 0
    %401 = vmatpush1.bf16.xpose.msra.mxu0 %v398
    %402 = vmatprep.subr.bf16.mxu0 0
    %403 = vmatpush1.bf16.xpose.msra.mxu0 0
    %404 = vmatprep.subr.bf16.mxu0 0
    %405 = vmatpush1.bf16.xpose.msra.mxu0 0
    %406 = vmatprep.subr.bf16.mxu0 0
    %407 = vmatpush1.bf16.xpose.msra.mxu0 0
    %408 = vmatprep.subr.bf16.mxu0 0
    %409 = vmatpush1.bf16.xpose.msra.mxu0 0
    %410 = vmatprep.subr.bf16.mxu0 0
    %411 = vmatpush1.bf16.xpose.msra.mxu0 0
    %412 = vmatprep.subr.bf16.mxu0 0
    %413 = vmatpush1.bf16.xpose.msra.mxu0 0
    %414 = vmatprep.subr.bf16.mxu0 0
    %415 = vmatpush1.bf16.xpose.msra.mxu0 0
    %416 = vmatprep.subr.bf16.mxu0 0
    %417 = vmatpush1.bf16.xpose.msra.mxu0 0
    %418 = vmatprep.subr.bf16.mxu0 0
    %419 = vmatpush1.bf16.xpose.msra.mxu0 0
    %420 = vmatprep.subr.bf16.mxu0 0
    %421 = vmatpush1.bf16.xpose.msra.mxu0 0
    %422 = vmatprep.subr.bf16.mxu0 0
    %423 = vmatpush1.bf16.xpose.msra.mxu0 0
    %424 = vmatprep.subr.bf16.mxu0 0
    %425 = vmatpush1.bf16.xpose.msra.mxu0 0
    %426 = vmatprep.subr.bf16.mxu0 0
    %427 = vmatpush1.bf16.xpose.msra.mxu0 0
    %428 = vmatprep.subr.bf16.mxu0 0
    %429 = vmatpush1.bf16.xpose.msra.mxu0 0
    %430 = vmatprep.subr.bf16.mxu0 0
    %431 = vmatpush1.bf16.xpose.msra.mxu0 0
    %432 = vmatprep.mubr.bf16.mxu0 0
    %433 = vmatmul.mubr.bf16.gmra.mrb[0].mxu0 %v399
    %v434 = vpop.f32.mrb[0].mxu0
    %v435 = vadd.f32 0.0, %v434
    %v436 = vpop.f32.mrb[0].mxu0
    %v437 = vpop.f32.mrb[0].mxu0
    %v438 = vpop.f32.mrb[0].mxu0
    %439 = vdwg.mxu0
    %vm440 = vcmask 64512
    %441 = vst.msk [vmem:[#allocation10] sm:$0xff] %vm440, %v435
    // Predicated region
    $region42: #{tpu_custom_call.1} parent=1 // pred_check
      _
    $region43: #{tpu_custom_call.1} parent=1 // pred_check_branch
      %443 = sbr.rel (0) target = $region45
    $region44: #{tpu_custom_call.1} parent=1 // pred_region
      %s445 = ssub.s32 128, 128
      %446 = vsyncadd [#allocation4], %s445
      %s448 = sshll.u32 [#allocation10], 4
      %s449 = int_to_ptr.vmem [resolvable:$true] %s448
      %451 = dma.vmem_to_hbm [thread:$0]  %s449, 128, %s6, [#allocation4]
    $region45: #{tpu_custom_call.1} parent=1 // pred_fallthru
      _
    // Predicated region
    $region46: #{tpu_custom_call.1} parent=1 // pred_check
      _
    $region47: #{tpu_custom_call.1} parent=1 // pred_check_branch
      %453 = sbr.rel (0) target = $region49
    $region48: #{tpu_custom_call.1} parent=1 // pred_region
      %454 = dma.done [#allocation4], 128
    $region49: #{tpu_custom_call.1} parent=1 // pred_fallthru
      _
    %455 = vsyncpa [#allocation3], 1
    %456 = vsyncpa [#allocation6], 1
    %457 = vsyncpa [#allocation9], 1
    %458 = vsyncpa [#allocation4], 1

</llo_original>
